<compile_context>
chip_gen: v5e
topology: v5e:2x2
jax: 0.10.0
libtpu: 0.0.40
codegen_flags: <defaults>
</compile_context>

<pallas_src>
import jax
import jax.numpy as jnp
from jax import lax
from jax.experimental import pallas as pl
from jax.experimental.pallas import tpu as pltpu


def mlp_kernel(x_ref, w1_ref, b1_ref, w2_ref, b2_ref, w3t_ref, b3_ref, o_ref):
    # Layer 1: bf16 MXU matmul with f32 accumulation; Dropout = identity at inference.
    h = jnp.dot(x_ref[...], w1_ref[...], preferred_element_type=jnp.float32)
    h = jnp.maximum(h + b1_ref[...], 0.0)                      # bias add + ReLU in f32 (VPU)
    # Layer 2: cast activation to bf16 for the MXU, accumulate in f32.
    h = jnp.dot(h.astype(jnp.bfloat16), w2_ref[...],
                preferred_element_type=jnp.float32)
    h = jnp.maximum(h + b2_ref[...], 0.0)
    # Output layer (out_dim is tiny): contract over the feature axis of both operands so the
    # result lands directly lane-dense as (out_dim, TB): o[o, b] = sum_k w3t[o, k] * h[b, k].
    out_t = lax.dot_general(
        w3t_ref[...], h,
        dimension_numbers=(((1,), (1,)), ((), ())),
        preferred_element_type=jnp.float32)
    o_ref[...] = (out_t + b3_ref[...]).astype(o_ref.dtype)


def _round_up(n, m):
    return pl.cdiv(n, m) * m


def mlp_forward(x, params, *, block_rows=512):
    """x: (B, input_dim) float32. params: dict of w1,b1,w2,b2,w3,b3 (w_i as (in, out)).

    Returns squeeze() of the (B, output_dim) result, matching the PyTorch module
    (note: like torch .squeeze(), a B==1 batch also gets squeezed).
    """
    # bf16 for the HBM-dominant MXU operands; biases / final (tiny) layer stay f32.
    w1 = params["w1"].astype(jnp.bfloat16)
    w2 = params["w2"].astype(jnp.bfloat16)
    b1 = params["b1"]            # (1, h0) f32
    b2 = params["b2"]            # (1, h1) f32
    w3t = params["w3"].T         # (out_dim, h1) f32 -> lane-dense final layer
    b3 = params["b3"].T          # (out_dim, 1) f32

    B, in_dim = x.shape
    out_dim = w3t.shape[0]

    # Batch tile: multiple of 128 (keeps the lane-major output tile unmasked), capped at
    # block_rows; pad B up to a whole number of tiles. Padded rows are sliced off afterwards.
    tb = min(block_rows, _round_up(B, 128))
    b_pad = _round_up(B, tb)
    xp = x if b_pad == B else jnp.pad(x, ((0, b_pad - B), (0, 0)))
    xp = xp.astype(jnp.bfloat16)

    grid = (b_pad // tb,)

    out_t = pl.pallas_call(
        mlp_kernel,
        out_shape=jax.ShapeDtypeStruct((out_dim, b_pad), jnp.float32),
        grid=grid,
        in_specs=[
            pl.BlockSpec((tb, in_dim), lambda i: (i, 0)),      # x: streamed per tile
            pl.BlockSpec(w1.shape, lambda i: (0, 0)),          # weights/biases: resident
            pl.BlockSpec(b1.shape, lambda i: (0, 0)),
            pl.BlockSpec(w2.shape, lambda i: (0, 0)),
            pl.BlockSpec(b2.shape, lambda i: (0, 0)),
            pl.BlockSpec(w3t.shape, lambda i: (0, 0)),
            pl.BlockSpec(b3.shape, lambda i: (0, 0)),
        ],
        out_specs=pl.BlockSpec((out_dim, tb), lambda i: (0, i)),  # lane-dense output tile
        compiler_params=pltpu.CompilerParams(
            dimension_semantics=("parallel",)),                # v7x: shard across both TCs
    )(xp, w1, b1, w2, b2, w3t, b3)

    out = out_t[:, :B].T            # (B, out_dim)
    return jnp.squeeze(out)         # matches PyTorch .squeeze()


def init_params(key, input_dim, hidden_dims, output_dim):
    """Deterministic PyTorch-Linear-style init (uniform(-1/sqrt(fan_in), 1/sqrt(fan_in)))."""
    dims = [input_dim] + list(hidden_dims) + [output_dim]
    params = {}
    for i in range(len(dims) - 1):
        fan_in, fan_out = dims[i], dims[i + 1]
        key, kw, kb = jax.random.split(key, 3)
        bound = 1.0 / (fan_in ** 0.5)
        # Stored as (in, out); equivalent to PyTorch's (out, in) weight transposed.
        params[f"w{i+1}"] = jax.random.uniform(
            kw, (fan_in, fan_out), jnp.float32, -bound, bound)
        params[f"b{i+1}"] = jax.random.uniform(
            kb, (1, fan_out), jnp.float32, -bound, bound)
    return params


if __name__ == "__main__":
    key = jax.random.PRNGKey(0)
    # Small demo shapes; batch=300 with block_rows=128 exercises a 3-step grid with a
    # padded (ragged) final tile. Production-sized batches would use block_rows=512+.
    batch, input_dim, hidden_dims, output_dim = 300, 16, [32, 32], 1

    kx, kp = jax.random.split(key)
    x = jax.random.normal(kx, (batch, input_dim), dtype=jnp.float32)
    params = init_params(kp, input_dim, hidden_dims, output_dim)

    y = mlp_forward(x, params, block_rows=128)
    jax.block_until_ready(y)

    # Pure-JAX f32 reference (kernel uses bf16 MXU operands -> loosened tolerance).
    h = x
    h = jnp.maximum(h @ params["w1"] + params["b1"], 0.0)
    h = jnp.maximum(h @ params["w2"] + params["b2"], 0.0)
    ref = jnp.squeeze(h @ params["w3"] + params["b3"])
    assert y.shape == ref.shape == (batch,)
    assert jnp.allclose(y, ref, atol=2e-2, rtol=2e-2)

    print("KERNEL_OK")
</pallas_src>

<mosaic_0001>
module attributes {stable_mosaic.version = 11 : i64} {
  func.func @mlp_kernel(%arg0: i32, %arg1: memref<128x16xbf16, #tpu.memory_space<vmem>>, %arg2: memref<16x32xbf16, #tpu.memory_space<vmem>>, %arg3: memref<1x32xf32, #tpu.memory_space<vmem>>, %arg4: memref<32x32xbf16, #tpu.memory_space<vmem>>, %arg5: memref<1x32xf32, #tpu.memory_space<vmem>>, %arg6: memref<1x32xf32, #tpu.memory_space<vmem>>, %arg7: memref<1x1xf32, #tpu.memory_space<vmem>>, %arg8: memref<1x128xf32, #tpu.memory_space<vmem>>) attributes {dimension_semantics = [#tpu.dimension_semantics<parallel>], iteration_bounds = array<i64: 3>, scalar_prefetch = 0 : i64, scratch_operands = 0 : i64, tpu.core_type = #tpu.core_type<tc>, window_params = [{transform_indices = @transform_0, window_bounds = array<i64: 128, 16>}, {pipeline_mode = #tpu.pipeline_mode<synchronous>, transform_indices = @transform_1, window_bounds = array<i64: 16, 32>}, {pipeline_mode = #tpu.pipeline_mode<synchronous>, transform_indices = @transform_2, window_bounds = array<i64: 1, 32>}, {pipeline_mode = #tpu.pipeline_mode<synchronous>, transform_indices = @transform_3, window_bounds = array<i64: 32, 32>}, {pipeline_mode = #tpu.pipeline_mode<synchronous>, transform_indices = @transform_4, window_bounds = array<i64: 1, 32>}, {pipeline_mode = #tpu.pipeline_mode<synchronous>, transform_indices = @transform_5, window_bounds = array<i64: 1, 32>}, {pipeline_mode = #tpu.pipeline_mode<synchronous>, transform_indices = @transform_6, window_bounds = array<i64: 1, 1>}, {transform_indices = @transform_7, window_bounds = array<i64: 1, 128>}]} {
    %c0 = arith.constant 0 : index
    %c0_0 = arith.constant 0 : index
    %0 = vector.load %arg1[%c0, %c0_0] : memref<128x16xbf16, #tpu.memory_space<vmem>>, vector<128x16xbf16>
    %c0_1 = arith.constant 0 : index
    %c0_2 = arith.constant 0 : index
    %1 = vector.load %arg2[%c0_1, %c0_2] : memref<16x32xbf16, #tpu.memory_space<vmem>>, vector<16x32xbf16>
    %cst = arith.constant dense<0.000000e+00> : vector<128x32xf32>
    %2 = tpu.matmul %0, %1, %cst {dimension_numbers = #tpu.dot_dimension_numbers<[1], [0], [0], [1], [0, 0, 1, 1], [], []>} : vector<128x16xbf16>, vector<16x32xbf16>, vector<128x32xf32> -> vector<128x32xf32>
    %c0_3 = arith.constant 0 : index
    %c0_4 = arith.constant 0 : index
    %3 = vector.load %arg3[%c0_3, %c0_4] : memref<1x32xf32, #tpu.memory_space<vmem>>, vector<1x32xf32>
    %4 = vector.broadcast %3 : vector<1x32xf32> to vector<128x32xf32>
    %5 = arith.addf %2, %4 : vector<128x32xf32>
    %cst_5 = arith.constant 0.000000e+00 : f32
    %6 = vector.broadcast %cst_5 : f32 to vector<128x32xf32>
    %7 = arith.maximumf %5, %6 : vector<128x32xf32>
    %8 = arith.truncf %7 : vector<128x32xf32> to vector<128x32xbf16>
    %c0_6 = arith.constant 0 : index
    %c0_7 = arith.constant 0 : index
    %9 = vector.load %arg4[%c0_6, %c0_7] : memref<32x32xbf16, #tpu.memory_space<vmem>>, vector<32x32xbf16>
    %cst_8 = arith.constant dense<0.000000e+00> : vector<128x32xf32>
    %10 = tpu.matmul %8, %9, %cst_8 {dimension_numbers = #tpu.dot_dimension_numbers<[1], [0], [0], [1], [0, 0, 1, 1], [], []>} : vector<128x32xbf16>, vector<32x32xbf16>, vector<128x32xf32> -> vector<128x32xf32>
    %c0_9 = arith.constant 0 : index
    %c0_10 = arith.constant 0 : index
    %11 = vector.load %arg5[%c0_9, %c0_10] : memref<1x32xf32, #tpu.memory_space<vmem>>, vector<1x32xf32>
    %12 = vector.broadcast %11 : vector<1x32xf32> to vector<128x32xf32>
    %13 = arith.addf %10, %12 : vector<128x32xf32>
    %cst_11 = arith.constant 0.000000e+00 : f32
    %14 = vector.broadcast %cst_11 : f32 to vector<128x32xf32>
    %15 = arith.maximumf %13, %14 : vector<128x32xf32>
    %c0_12 = arith.constant 0 : index
    %c0_13 = arith.constant 0 : index
    %16 = vector.load %arg6[%c0_12, %c0_13] : memref<1x32xf32, #tpu.memory_space<vmem>>, vector<1x32xf32>
    %cst_14 = arith.constant dense<0.000000e+00> : vector<1x128xf32>
    %17 = tpu.matmul %16, %15, %cst_14 {dimension_numbers = #tpu.dot_dimension_numbers<[1], [1], [0], [0], [0, 0, 1, 0], [], []>} : vector<1x32xf32>, vector<128x32xf32>, vector<1x128xf32> -> vector<1x128xf32>
    %c0_15 = arith.constant 0 : index
    %c0_16 = arith.constant 0 : index
    %18 = vector.load %arg7[%c0_15, %c0_16] : memref<1x1xf32, #tpu.memory_space<vmem>>, vector<1x1xf32>
    %19 = vector.broadcast %18 : vector<1x1xf32> to vector<1x128xf32>
    %20 = arith.addf %17, %19 : vector<1x128xf32>
    %c0_17 = arith.constant 0 : index
    %c0_18 = arith.constant 0 : index
    %21 = vector.load %arg8[%c0_17, %c0_18] : memref<1x128xf32, #tpu.memory_space<vmem>>, vector<1x128xf32>
    tpu.vector_store %arg8[%c0_17, %c0_18], %20 {strides = array<i32>} : memref<1x128xf32, #tpu.memory_space<vmem>>, vector<1x128xf32>,
    return
  }
  func.func @transform_0(%arg0: i32) -> (i32, i32) {
    %c0_i32 = arith.constant 0 : i32
    %c0_i32_0 = arith.constant 0 : i32
    return %arg0, %c0_i32 : i32, i32
  }
  func.func @transform_1(%arg0: i32) -> (i32, i32) {
    %c0_i32 = arith.constant 0 : i32
    %c0_i32_0 = arith.constant 0 : i32
    %c0_i32_1 = arith.constant 0 : i32
    return %c0_i32, %c0_i32_0 : i32, i32
  }
  func.func @transform_2(%arg0: i32) -> (i32, i32) {
    %c0_i32 = arith.constant 0 : i32
    %c0_i32_0 = arith.constant 0 : i32
    %c0_i32_1 = arith.constant 0 : i32
    return %c0_i32, %c0_i32_0 : i32, i32
  }
  func.func @transform_3(%arg0: i32) -> (i32, i32) {
    %c0_i32 = arith.constant 0 : i32
    %c0_i32_0 = arith.constant 0 : i32
    %c0_i32_1 = arith.constant 0 : i32
    return %c0_i32, %c0_i32_0 : i32, i32
  }
  func.func @transform_4(%arg0: i32) -> (i32, i32) {
    %c0_i32 = arith.constant 0 : i32
    %c0_i32_0 = arith.constant 0 : i32
    %c0_i32_1 = arith.constant 0 : i32
    return %c0_i32, %c0_i32_0 : i32, i32
  }
  func.func @transform_5(%arg0: i32) -> (i32, i32) {
    %c0_i32 = arith.constant 0 : i32
    %c0_i32_0 = arith.constant 0 : i32
    %c0_i32_1 = arith.constant 0 : i32
    return %c0_i32, %c0_i32_0 : i32, i32
  }
  func.func @transform_6(%arg0: i32) -> (i32, i32) {
    %c0_i32 = arith.constant 0 : i32
    %c0_i32_0 = arith.constant 0 : i32
    %c0_i32_1 = arith.constant 0 : i32
    return %c0_i32, %c0_i32_0 : i32, i32
  }
  func.func @transform_7(%arg0: i32) -> (i32, i32) {
    %c0_i32 = arith.constant 0 : i32
    %c0_i32_0 = arith.constant 0 : i32
    return %c0_i32, %arg0 : i32, i32
  }
}

</mosaic_0001>

<llo_original>
// kernel: tpu_custom_call.1
$region0: #{tpu_custom_call.1}
  #allocation0 [shape = 'u32[]', space=smem, size = 0x4, offset = 0x4, fixed_abs, tag = 'smem constant byte address 0x4 - core index']
  #allocation1 [shape = 'u32[72,128]{1,0:T(1,128)}', space=vmem, size = 0x9000, scoped, tag = 'internal scratch']
  #allocation2 [shape = 'f32[1,1]{1,0:T(1,128)S(1)}', space=vmem, size = 0x200, scoped, tag = 'scoped memory for tpu_custom_call.1']
  %s0 = inlined_call_operand.vmem [shape: bf16[384,16], index: 0, kind: input, shape index: {}]
  %s1 = inlined_call_operand.vmem [shape: bf16[16,32], index: 1, kind: input, shape index: {}]
  %s2 = inlined_call_operand.vmem [shape: f32[1,32], index: 2, kind: input, shape index: {}]
  %s3 = inlined_call_operand.vmem [shape: bf16[32,32], index: 3, kind: input, shape index: {}]
  %s4 = inlined_call_operand.vmem [shape: f32[1,32], index: 4, kind: input, shape index: {}]
  %s5 = inlined_call_operand.vmem [shape: f32[1,32], index: 5, kind: input, shape index: {}]
  %s6 = inlined_call_operand.<no memory space> [shape: f32[1,1], index: 6, kind: input, shape index: {}]
  %s7 = inlined_call_operand.hbm [shape: f32[1,384], index: 7, kind: output, shape index: {}]
  %s8 = sld [smem:[#allocation0]]
  $region61: #{tpu_custom_call.1} parent=0
    _
  %s10 = ssub.s32 1, %s8
  %s11 = scalar_select 0, %s10, %s8
  %v12 = vstv %s6
  %13 = vst [vmem:[#allocation2] sm:$0x1] %v12
  $region1: #{tpu_custom_call.1} parent=0
    #allocation3 [shape = 'u8[1024]{0}', space=vmem, size = 0x400, scoped, tag = 'output window, operand 0']
    #allocation4 [shape = 's32[2]{0}', space=sflag, size = 0x8, scoped, tag = 'scoped memory for tpu_custom_call.1']
    %14 = vsyncpa [#allocation4], 0
    %s15 = scalar_lea.sflag [#allocation4], 1
    %16 = vsyncpa %s15, 0
    loop: start=0, step=1, limit=5
    $region2: #{tpu_custom_call.1} parent=1 // loop_pre_header
      _
    $region3: #{tpu_custom_call.1} parent=1 // loop_header
      %s18 = sphi 0, %s22
      %p19 = scmp.ge.s32.totalorder %s18, 5
      %s28 = sphi 0, %s30
      %s31 = sphi 0, %s28
      %s32 = sphi 0, %s31
      %s48 = sphi 0, %s32
      %s52 = sphi 0, %s52
      %s54 = sphi 0, %s52
      %s55 = sphi 0, %s54
      %s69 = sphi 0, %s55
      %s73 = sphi 0, %s73
      %s75 = sphi 0, %s73
      %s76 = sphi 0, %s75
      %s90 = sphi 0, %s76
      %s94 = sphi 0, %s94
      %s96 = sphi 0, %s94
      %s97 = sphi 0, %s96
      %s111 = sphi 0, %s97
      %s115 = sphi 0, %s115
      %s117 = sphi 0, %s115
      %s118 = sphi 0, %s117
      %s132 = sphi 0, %s118
      %s136 = sphi 0, %s136
      %s138 = sphi 0, %s136
      %s139 = sphi 0, %s138
      %s153 = sphi 0, %s139
      %s157 = sphi 0, %s157
      %s159 = sphi 0, %s157
      %s160 = sphi 0, %s159
      %s174 = sphi 0, %s160
      %s180 = sphi 0, %s182
      %s183 = sphi 0, %s180
      %s184 = sphi 0, %s183
      %s200 = sphi 0, %s184
    $region4: #{tpu_custom_call.1} parent=1 // loop_header_branch
      %21 = sbr.rel (%p19) target = $region8
    $region5: #{tpu_custom_call.1} parent=1 // loop_body
      %s23 = ssub.s32 %s18, 1
      %s24 = ssub.s32 %s18, 2
      %s25 = sadd.s32 %s18, 1
      %s26 = ssub.s32 %s18, %s25
      %p27 = scmp.eq.s32.totalorder %s26, 0
      %s29 = sadd.s32 %s28, 1
      %s30 = scalar_select %p27, %s28, %s29
      %p33 = pneg %p27
      %p34 = scmp.eq.s32.totalorder %s18, 2
      %p35 = por %p33, %p34
      %p36 = scmp.ne.s32.totalorder %s28, %s31
      %p37 = scmp.eq.s32.totalorder %s18, 0
      %p38 = por %p36, %p37
      %p39 = scmp.ne.s32.totalorder %s28, %s31
      %p40 = scmp.eq.s32.totalorder %s23, 2
      %p41 = por %p39, %p40
      %p42 = scmp.ne.s32.totalorder %s31, %s32
      %p43 = scmp.eq.s32.totalorder %s23, 0
      %p44 = por %p42, %p43
      %p45 = scmp.ne.s32.totalorder %s31, %s32
      %p46 = scmp.eq.s32.totalorder %s24, 2
      %p47 = por %p45, %p46
      %p49 = scmp.ne.s32.totalorder %s32, %s48
      %p50 = scmp.eq.s32.totalorder %s24, 0
      %p51 = por %p49, %p50
      %s53 = sadd.s32 %s52, 1
      %p56 = scmp.eq.s32.totalorder %s18, 2
      %p57 = scmp.ne.s32.totalorder %s52, %s54
      %p58 = scmp.eq.s32.totalorder %s18, 0
      %p59 = por %p57, %p58
      %p60 = scmp.ne.s32.totalorder %s52, %s54
      %p61 = scmp.eq.s32.totalorder %s23, 2
      %p62 = por %p60, %p61
      %p63 = scmp.ne.s32.totalorder %s54, %s55
      %p64 = scmp.eq.s32.totalorder %s23, 0
      %p65 = por %p63, %p64
      %p66 = scmp.ne.s32.totalorder %s54, %s55
      %p67 = scmp.eq.s32.totalorder %s24, 2
      %p68 = por %p66, %p67
      %p70 = scmp.ne.s32.totalorder %s55, %s69
      %p71 = scmp.eq.s32.totalorder %s24, 0
      %p72 = por %p70, %p71
      %s74 = sadd.s32 %s73, 1
      %p77 = scmp.eq.s32.totalorder %s18, 2
      %p78 = scmp.ne.s32.totalorder %s73, %s75
      %p79 = scmp.eq.s32.totalorder %s18, 0
      %p80 = por %p78, %p79
      %p81 = scmp.ne.s32.totalorder %s73, %s75
      %p82 = scmp.eq.s32.totalorder %s23, 2
      %p83 = por %p81, %p82
      %p84 = scmp.ne.s32.totalorder %s75, %s76
      %p85 = scmp.eq.s32.totalorder %s23, 0
      %p86 = por %p84, %p85
      %p87 = scmp.ne.s32.totalorder %s75, %s76
      %p88 = scmp.eq.s32.totalorder %s24, 2
      %p89 = por %p87, %p88
      %p91 = scmp.ne.s32.totalorder %s76, %s90
      %p92 = scmp.eq.s32.totalorder %s24, 0
      %p93 = por %p91, %p92
      %s95 = sadd.s32 %s94, 1
      %p98 = scmp.eq.s32.totalorder %s18, 2
      %p99 = scmp.ne.s32.totalorder %s94, %s96
      %p100 = scmp.eq.s32.totalorder %s18, 0
      %p101 = por %p99, %p100
      %p102 = scmp.ne.s32.totalorder %s94, %s96
      %p103 = scmp.eq.s32.totalorder %s23, 2
      %p104 = por %p102, %p103
      %p105 = scmp.ne.s32.totalorder %s96, %s97
      %p106 = scmp.eq.s32.totalorder %s23, 0
      %p107 = por %p105, %p106
      %p108 = scmp.ne.s32.totalorder %s96, %s97
      %p109 = scmp.eq.s32.totalorder %s24, 2
      %p110 = por %p108, %p109
      %p112 = scmp.ne.s32.totalorder %s97, %s111
      %p113 = scmp.eq.s32.totalorder %s24, 0
      %p114 = por %p112, %p113
      %s116 = sadd.s32 %s115, 1
      %p119 = scmp.eq.s32.totalorder %s18, 2
      %p120 = scmp.ne.s32.totalorder %s115, %s117
      %p121 = scmp.eq.s32.totalorder %s18, 0
      %p122 = por %p120, %p121
      %p123 = scmp.ne.s32.totalorder %s115, %s117
      %p124 = scmp.eq.s32.totalorder %s23, 2
      %p125 = por %p123, %p124
      %p126 = scmp.ne.s32.totalorder %s117, %s118
      %p127 = scmp.eq.s32.totalorder %s23, 0
      %p128 = por %p126, %p127
      %p129 = scmp.ne.s32.totalorder %s117, %s118
      %p130 = scmp.eq.s32.totalorder %s24, 2
      %p131 = por %p129, %p130
      %p133 = scmp.ne.s32.totalorder %s118, %s132
      %p134 = scmp.eq.s32.totalorder %s24, 0
      %p135 = por %p133, %p134
      %s137 = sadd.s32 %s136, 1
      %p140 = scmp.eq.s32.totalorder %s18, 2
      %p141 = scmp.ne.s32.totalorder %s136, %s138
      %p142 = scmp.eq.s32.totalorder %s18, 0
      %p143 = por %p141, %p142
      %p144 = scmp.ne.s32.totalorder %s136, %s138
      %p145 = scmp.eq.s32.totalorder %s23, 2
      %p146 = por %p144, %p145
      %p147 = scmp.ne.s32.totalorder %s138, %s139
      %p148 = scmp.eq.s32.totalorder %s23, 0
      %p149 = por %p147, %p148
      %p150 = scmp.ne.s32.totalorder %s138, %s139
      %p151 = scmp.eq.s32.totalorder %s24, 2
      %p152 = por %p150, %p151
      %p154 = scmp.ne.s32.totalorder %s139, %s153
      %p155 = scmp.eq.s32.totalorder %s24, 0
      %p156 = por %p154, %p155
      %s158 = sadd.s32 %s157, 1
      %p161 = scmp.eq.s32.totalorder %s18, 2
      %p162 = scmp.ne.s32.totalorder %s157, %s159
      %p163 = scmp.eq.s32.totalorder %s18, 0
      %p164 = por %p162, %p163
      %p165 = scmp.ne.s32.totalorder %s157, %s159
      %p166 = scmp.eq.s32.totalorder %s23, 2
      %p167 = por %p165, %p166
      %p168 = scmp.ne.s32.totalorder %s159, %s160
      %p169 = scmp.eq.s32.totalorder %s23, 0
      %p170 = por %p168, %p169
      %p171 = scmp.ne.s32.totalorder %s159, %s160
      %p172 = scmp.eq.s32.totalorder %s24, 2
      %p173 = por %p171, %p172
      %p175 = scmp.ne.s32.totalorder %s160, %s174
      %p176 = scmp.eq.s32.totalorder %s24, 0
      %p177 = por %p175, %p176
      %s178 = ssub.s32 %s18, %s25
      %p179 = scmp.eq.s32.totalorder %s178, 0
      %s181 = sadd.s32 %s180, 1
      %s182 = scalar_select %p179, %s180, %s181
      %p185 = pneg %p179
      %p186 = scmp.eq.s32.totalorder %s18, 2
      %p187 = por %p185, %p186
      %p188 = scmp.ne.s32.totalorder %s180, %s183
      %p189 = scmp.eq.s32.totalorder %s18, 0
      %p190 = por %p188, %p189
      %p191 = scmp.ne.s32.totalorder %s180, %s183
      %p192 = scmp.eq.s32.totalorder %s23, 2
      %p193 = por %p191, %p192
      %p194 = scmp.ne.s32.totalorder %s183, %s184
      %p195 = scmp.eq.s32.totalorder %s23, 0
      %p196 = por %p194, %p195
      %p197 = scmp.ne.s32.totalorder %s183, %s184
      %p198 = scmp.eq.s32.totalorder %s24, 2
      %p199 = por %p197, %p198
      %p201 = scmp.ne.s32.totalorder %s184, %s200
      %p202 = scmp.eq.s32.totalorder %s24, 0
      %p203 = por %p201, %p202
      %p204 = scmp.le.s32.totalorder 1, %s18
      %p205 = scmp.lt.s32.totalorder %s18, 4
      %p206 = pnand %p204, %p205
      %p207 = pneg %p206
      // Predicated region
      $region9: #{tpu_custom_call.1} parent=5 // pred_check
        _
      $region10: #{tpu_custom_call.1} parent=5 // pred_check_branch
        %209 = sbr.rel (%p206) target = $region12
      $region11: #{tpu_custom_call.1} parent=5 // pred_region
        %s210 = ssub.s32 %s18, 1
        // Predicated region
        $region13: #{tpu_custom_call.1} parent=11 // pred_check
          %p211 = pneg %p65
        $region14: #{tpu_custom_call.1} parent=11 // pred_check_branch
          %213 = sbr.rel (%p211) target = $region16
        $region15: #{tpu_custom_call.1} parent=11 // pred_region
          _
        $region16: #{tpu_custom_call.1} parent=11 // pred_fallthru
          _
        // Predicated region
        $region17: #{tpu_custom_call.1} parent=11 // pred_check
          %p214 = pneg %p86
        $region18: #{tpu_custom_call.1} parent=11 // pred_check_branch
          %216 = sbr.rel (%p214) target = $region20
        $region19: #{tpu_custom_call.1} parent=11 // pred_region
          _
        $region20: #{tpu_custom_call.1} parent=11 // pred_fallthru
          _
        // Predicated region
        $region21: #{tpu_custom_call.1} parent=11 // pred_check
          %p217 = pneg %p107
        $region22: #{tpu_custom_call.1} parent=11 // pred_check_branch
          %219 = sbr.rel (%p217) target = $region24
        $region23: #{tpu_custom_call.1} parent=11 // pred_region
          _
        $region24: #{tpu_custom_call.1} parent=11 // pred_fallthru
          _
        // Predicated region
        $region25: #{tpu_custom_call.1} parent=11 // pred_check
          %p220 = pneg %p128
        $region26: #{tpu_custom_call.1} parent=11 // pred_check_branch
          %222 = sbr.rel (%p220) target = $region28
        $region27: #{tpu_custom_call.1} parent=11 // pred_region
          _
        $region28: #{tpu_custom_call.1} parent=11 // pred_fallthru
          _
        // Predicated region
        $region29: #{tpu_custom_call.1} parent=11 // pred_check
          %p223 = pneg %p149
        $region30: #{tpu_custom_call.1} parent=11 // pred_check_branch
          %225 = sbr.rel (%p223) target = $region32
        $region31: #{tpu_custom_call.1} parent=11 // pred_region
          _
        $region32: #{tpu_custom_call.1} parent=11 // pred_fallthru
          _
        // Predicated region
        $region33: #{tpu_custom_call.1} parent=11 // pred_check
          %p226 = pneg %p170
        $region34: #{tpu_custom_call.1} parent=11 // pred_check_branch
          %228 = sbr.rel (%p226) target = $region36
        $region35: #{tpu_custom_call.1} parent=11 // pred_region
          _
        $region36: #{tpu_custom_call.1} parent=11 // pred_fallthru
          _
      $region12: #{tpu_custom_call.1} parent=5 // pred_fallthru
        _
      %p229 = scmp.lt.s32.totalorder %s18, 3
      // Predicated region
      $region37: #{tpu_custom_call.1} parent=5 // pred_check
        %p230 = pneg %p229
      $region38: #{tpu_custom_call.1} parent=5 // pred_check_branch
        %232 = sbr.rel (%p230) target = $region40
      $region39: #{tpu_custom_call.1} parent=5 // pred_region
        // Predicated region
        $region41: #{tpu_custom_call.1} parent=39 // pred_check
          %p233 = pneg %p38
        $region42: #{tpu_custom_call.1} parent=39 // pred_check_branch
          %235 = sbr.rel (%p233) target = $region44
        $region43: #{tpu_custom_call.1} parent=39 // pred_region
          %s236 = smul.u32 16, %s18
          %p237 = scmp.lt.s32.totalorder %s236, 47
          %s238 = scalar_select %p237, %s236, 47
          %s239 = smul.addr %s238, 4
          %s240 = scalar_lea.vmem %s0, %s239
          %s241 = smul.u32 16, %s18
        $region44: #{tpu_custom_call.1} parent=39 // pred_fallthru
          _
      $region40: #{tpu_custom_call.1} parent=5 // pred_fallthru
        _
      %p242 = scmp.le.s32.totalorder 1, %s18
      %p243 = scmp.lt.s32.totalorder %s18, 4
      %p244 = pnand %p242, %p243
      %p245 = pneg %p244
      // Predicated region
      $region45: #{tpu_custom_call.1} parent=5 // pred_check
        _
      $region46: #{tpu_custom_call.1} parent=5 // pred_check_branch
        %247 = sbr.rel (%p244) target = $region48
      $region47: #{tpu_custom_call.1} parent=5 // pred_region
        %s248 = ssub.s32 %s18, 1
        %s249 = smul.u32 16, %s23
        %p250 = scmp.lt.s32.totalorder %s249, 47
        %s251 = scalar_select %p250, %s249, 47
        %s252 = smul.addr %s251, 4
        %s253 = scalar_lea.vmem %s0, %s252
        %p254 = pneg %p44
        %p255 = pneg %p41
        %p256 = pneg %p65
        %p257 = pneg %p62
        %p258 = pneg %p86
        %p259 = pneg %p83
        %p260 = pneg %p107
        %p261 = pneg %p104
        %p262 = pneg %p128
        %p263 = pneg %p125
        %p264 = pneg %p149
        %p265 = pneg %p146
        %p266 = pneg %p170
        %p267 = pneg %p167
        %p268 = pneg %p196
        %p269 = pneg %p193
        %s270 = sand.u32 %s183, 1
        %s271 = scalar_lea.sflag [#allocation4], %s270
        %s272 = sand.u32 %s183, 1
        %s273 = scalar_lea.vmem [#allocation3], %s272
        %s274 = smul.u32 16, %s23
        %p275 = scmp.lt.s32.totalorder %s274, 47
        %s276 = scalar_select %p275, %s274, 47
        %s277 = smul.addr %s276, 4
        %s278 = scalar_lea.vmem %s0, %s277
        %s279 = smul.u32 16, %s23
        %v281 = vld [vmem:[%s278] sm:$0xf]
        %v282 = vld [vmem:[%s278 + $0x4] sm:$0xf]
        %v283 = vld [vmem:[%s278 + $0x8] sm:$0xf]
        %v284 = vld [vmem:[%s278 + $0xc] sm:$0xf]
        %v285 = vld [vmem:[%s278 + $0x10] sm:$0xf]
        %v286 = vld [vmem:[%s278 + $0x14] sm:$0xf]
        %v287 = vld [vmem:[%s278 + $0x18] sm:$0xf]
        %v288 = vld [vmem:[%s278 + $0x1c] sm:$0xf]
        %v289 = vld [vmem:[%s278 + $0x20] sm:$0xf]
        %v290 = vld [vmem:[%s278 + $0x24] sm:$0xf]
        %v291 = vld [vmem:[%s278 + $0x28] sm:$0xf]
        %v292 = vld [vmem:[%s278 + $0x2c] sm:$0xf]
        %v293 = vld [vmem:[%s278 + $0x30] sm:$0xf]
        %v294 = vld [vmem:[%s278 + $0x34] sm:$0xf]
        %v295 = vld [vmem:[%s278 + $0x38] sm:$0xf]
        %v296 = vld [vmem:[%s278 + $0x3c] sm:$0xf]
        %v297 = vld [vmem:[%s1] sm:$0xf]
        %v298 = vld [vmem:[%s1 + $0x4] sm:$0xf]
        %v299 = vld [vmem:[%s2] sm:$0x1]
        %v301 = vperm.slane %v299, 0
        %v319 = vunpack.c.l.b16 %v281
        %v320 = vunpack.c.l.b16 %v282
        %v321 = vunpack.c.l.b16 %v283
        %v322 = vunpack.c.l.b16 %v284
        %v323 = vunpack.c.l.b16 %v285
        %v324 = vunpack.c.l.b16 %v286
        %v325 = vunpack.c.l.b16 %v287
        %v326 = vunpack.c.l.b16 %v288
        %v327 = vunpack.c.l.b16 %v289
        %v328 = vunpack.c.l.b16 %v290
        %v329 = vunpack.c.l.b16 %v291
        %v330 = vunpack.c.l.b16 %v292
        %v331 = vunpack.c.l.b16 %v293
        %v332 = vunpack.c.l.b16 %v294
        %v333 = vunpack.c.l.b16 %v295
        %v334 = vunpack.c.l.b16 %v296
        %v335 = vpack.c.b16 %v320, %v319
        %v336 = vpack.c.b16 %v322, %v321
        %v337 = vpack.c.b16 %v324, %v323
        %v338 = vpack.c.b16 %v326, %v325
        %v339 = vpack.c.b16 %v328, %v327
        %v340 = vpack.c.b16 %v330, %v329
        %v341 = vpack.c.b16 %v332, %v331
        %v342 = vpack.c.b16 %v334, %v333
        %v345 = vunpack.c.l.b16 %v297
        %v346 = vunpack.c.l.b16 %v298
        %v347 = vpack.c.b16 %v346, %v345
        %vm349 = vcmask 130048
        %v351 = vsel %vm349, %v335, 0
        %v354 = vsel %vm349, %v336, 0
        %v357 = vsel %vm349, %v337, 0
        %v360 = vsel %vm349, %v338, 0
        %v363 = vsel %vm349, %v339, 0
        %v366 = vsel %vm349, %v340, 0
        %v369 = vsel %vm349, %v341, 0
        %v372 = vsel %vm349, %v342, 0
        %374 = vmatpush.bf16.msra.mxu0 0
        %375 = vmatpush.bf16.msra.mxu0 0
        %376 = vmatpush.bf16.msra.mxu0 0
        %377 = vmatpush.bf16.msra.mxu0 0
        %378 = vmatpush.bf16.msra.mxu0 0
        %379 = vmatpush.bf16.msra.mxu0 0
        %380 = vmatpush.bf16.msra.mxu0 0
        %381 = vmatpush.bf16.msra.mxu0 %v347
        %382 = vmatmul.bf16.gmra.mxu0 %v351
        %v383 = vpop.f32.mrf.mxu0
        %v384 = vadd.f32 %v301, %v383
        %v385 = vpop.f32.mrf.mxu0
        %v386 = vadd.f32 %v301, %v385
        %387 = vmatmul.bf16.gmra.mxu0 %v354
        %v388 = vpop.f32.mrf.mxu0
        %v389 = vadd.f32 %v301, %v388
        %v390 = vpop.f32.mrf.mxu0
        %v391 = vadd.f32 %v301, %v390
        %392 = vmatmul.bf16.gmra.mxu0 %v357
        %v393 = vpop.f32.mrf.mxu0
        %v394 = vadd.f32 %v301, %v393
        %v395 = vpop.f32.mrf.mxu0
        %v396 = vadd.f32 %v301, %v395
        %397 = vmatmul.bf16.gmra.mxu0 %v360
        %v398 = vpop.f32.mrf.mxu0
        %v399 = vadd.f32 %v301, %v398
        %v400 = vpop.f32.mrf.mxu0
        %v401 = vadd.f32 %v301, %v400
        %402 = vmatmul.bf16.gmra.mxu0 %v363
        %v403 = vpop.f32.mrf.mxu0
        %v404 = vadd.f32 %v301, %v403
        %v405 = vpop.f32.mrf.mxu0
        %v406 = vadd.f32 %v301, %v405
        %407 = vmatmul.bf16.gmra.mxu0 %v366
        %v408 = vpop.f32.mrf.mxu0
        %v409 = vadd.f32 %v301, %v408
        %v410 = vpop.f32.mrf.mxu0
        %v411 = vadd.f32 %v301, %v410
        %412 = vmatmul.bf16.gmra.mxu0 %v369
        %v413 = vpop.f32.mrf.mxu0
        %v414 = vadd.f32 %v301, %v413
        %v415 = vpop.f32.mrf.mxu0
        %v416 = vadd.f32 %v301, %v415
        %417 = vmatmul.bf16.gmra.mxu0 %v372
        %v418 = vpop.f32.mrf.mxu0
        %v419 = vadd.f32 %v301, %v418
        %v420 = vpop.f32.mrf.mxu0
        %v421 = vadd.f32 %v301, %v420
        %422 = vdwg.mxu0
        %v423 = vmax.f32 %v384, 0.0
        %v424 = vmax.f32 %v386, 0.0
        %v425 = vmax.f32 %v389, 0.0
        %v426 = vmax.f32 %v391, 0.0
        %v427 = vmax.f32 %v394, 0.0
        %v428 = vmax.f32 %v396, 0.0
        %v429 = vmax.f32 %v399, 0.0
        %v430 = vmax.f32 %v401, 0.0
        %v431 = vmax.f32 %v404, 0.0
        %v432 = vmax.f32 %v406, 0.0
        %v433 = vmax.f32 %v409, 0.0
        %v434 = vmax.f32 %v411, 0.0
        %v435 = vmax.f32 %v414, 0.0
        %v436 = vmax.f32 %v416, 0.0
        %v437 = vmax.f32 %v419, 0.0
        %v438 = vmax.f32 %v421, 0.0
        %v439 = vpack.c.bf16 %v424, %v423
        %v440 = vpack.c.bf16 %v426, %v425
        %v441 = vpack.c.bf16 %v428, %v427
        %v442 = vpack.c.bf16 %v430, %v429
        %v443 = vpack.c.bf16 %v432, %v431
        %v444 = vpack.c.bf16 %v434, %v433
        %v445 = vpack.c.bf16 %v436, %v435
        %v446 = vpack.c.bf16 %v438, %v437
        %v447 = vld [vmem:[%s3] sm:$0xf]
        %v448 = vld [vmem:[%s3 + $0x4] sm:$0xf]
        %v449 = vld [vmem:[%s3 + $0x8] sm:$0xf]
        %v450 = vld [vmem:[%s3 + $0xc] sm:$0xf]
        %v451 = vld [vmem:[%s4] sm:$0x1]
        %v453 = vperm.slane %v451, 0
        %v459 = vunpack.c.l.b16 %v447
        %v460 = vunpack.c.l.b16 %v448
        %v461 = vunpack.c.l.b16 %v449
        %v462 = vunpack.c.l.b16 %v450
        %v463 = vpack.c.b16 %v460, %v459
        %v464 = vpack.c.b16 %v462, %v461
        %vm467 = vcmask 261120
        %v469 = vsel %vm467, %v439, 0
        %v472 = vsel %vm467, %v440, 0
        %v475 = vsel %vm467, %v441, 0
        %v478 = vsel %vm467, %v442, 0
        %v481 = vsel %vm467, %v443, 0
        %v484 = vsel %vm467, %v444, 0
        %v487 = vsel %vm467, %v445, 0
        %v490 = vsel %vm467, %v446, 0
        %492 = vmatpush.bf16.msra.mxu0 0
        %493 = vmatpush.bf16.msra.mxu0 0
        %494 = vmatpush.bf16.msra.mxu0 0
        %495 = vmatpush.bf16.msra.mxu0 0
        %496 = vmatpush.bf16.msra.mxu0 0
        %497 = vmatpush.bf16.msra.mxu0 0
        %498 = vmatpush.bf16.msra.mxu0 %v464
        %499 = vmatpush.bf16.msra.mxu0 %v463
        %500 = vmatmul.bf16.gmra.mxu0 %v469
        %v501 = vpop.f32.mrf.mxu0
        %v502 = vadd.f32 %v453, %v501
        %v503 = vpop.f32.mrf.mxu0
        %v504 = vadd.f32 %v453, %v503
        %505 = vmatmul.bf16.gmra.mxu0 %v472
        %v506 = vpop.f32.mrf.mxu0
        %v507 = vadd.f32 %v453, %v506
        %v508 = vpop.f32.mrf.mxu0
        %v509 = vadd.f32 %v453, %v508
        %510 = vmatmul.bf16.gmra.mxu0 %v475
        %v511 = vpop.f32.mrf.mxu0
        %v512 = vadd.f32 %v453, %v511
        %v513 = vpop.f32.mrf.mxu0
        %v514 = vadd.f32 %v453, %v513
        %515 = vmatmul.bf16.gmra.mxu0 %v478
        %v516 = vpop.f32.mrf.mxu0
        %v517 = vadd.f32 %v453, %v516
        %v518 = vpop.f32.mrf.mxu0
        %v519 = vadd.f32 %v453, %v518
        %520 = vmatmul.bf16.gmra.mxu0 %v481
        %v521 = vpop.f32.mrf.mxu0
        %v522 = vadd.f32 %v453, %v521
        %v523 = vpop.f32.mrf.mxu0
        %v524 = vadd.f32 %v453, %v523
        %525 = vmatmul.bf16.gmra.mxu0 %v484
        %v526 = vpop.f32.mrf.mxu0
        %v527 = vadd.f32 %v453, %v526
        %v528 = vpop.f32.mrf.mxu0
        %v529 = vadd.f32 %v453, %v528
        %530 = vmatmul.bf16.gmra.mxu0 %v487
        %v531 = vpop.f32.mrf.mxu0
        %v532 = vadd.f32 %v453, %v531
        %v533 = vpop.f32.mrf.mxu0
        %v534 = vadd.f32 %v453, %v533
        %535 = vmatmul.bf16.gmra.mxu0 %v490
        %v536 = vpop.f32.mrf.mxu0
        %v537 = vadd.f32 %v453, %v536
        %v538 = vpop.f32.mrf.mxu0
        %v539 = vadd.f32 %v453, %v538
        %540 = vdwg.mxu0
        %v541 = vmax.f32 %v502, 0.0
        %v542 = vmax.f32 %v504, 0.0
        %v543 = vmax.f32 %v507, 0.0
        %v544 = vmax.f32 %v509, 0.0
        %v545 = vmax.f32 %v512, 0.0
        %v546 = vmax.f32 %v514, 0.0
        %v547 = vmax.f32 %v517, 0.0
        %v548 = vmax.f32 %v519, 0.0
        %v549 = vmax.f32 %v522, 0.0
        %v550 = vmax.f32 %v524, 0.0
        %v551 = vmax.f32 %v527, 0.0
        %v552 = vmax.f32 %v529, 0.0
        %v553 = vmax.f32 %v532, 0.0
        %v554 = vmax.f32 %v534, 0.0
        %v555 = vmax.f32 %v537, 0.0
        %v556 = vmax.f32 %v539, 0.0
        %v557 = vld [vmem:[%s5] sm:$0x1]
        %v558 = vld [vmem:[#allocation2] sm:$0x1]
        %560 = vset.pattern.permute.xlu0 0
        %561 = vperm.xlu0 %560, %v558
        %v562 = vpop.permute.xlu0 %561
        %v564 = vperm.slane %v562, 0
        %v566 = vsel %vm467, %v557, 0
        %v569 = vsel %vm467, %v541, 0
        %v572 = vsel %vm467, %v542, 0
        %v575 = vsel %vm467, %v543, 0
        %v578 = vsel %vm467, %v544, 0
        %v581 = vsel %vm467, %v545, 0
        %v584 = vsel %vm467, %v546, 0
        %v587 = vsel %vm467, %v547, 0
        %v590 = vsel %vm467, %v548, 0
        %v593 = vsel %vm467, %v549, 0
        %v596 = vsel %vm467, %v550, 0
        %v599 = vsel %vm467, %v551, 0
        %v602 = vsel %vm467, %v552, 0
        %v605 = vsel %vm467, %v553, 0
        %v608 = vsel %vm467, %v554, 0
        %v611 = vsel %vm467, %v555, 0
        %v614 = vsel %vm467, %v556, 0
        %616 = vmatpush.xpose.msra.mxu0 %v614
        %617 = vmatpush.xpose.msra.mxu0 %v611
        %618 = vmatpush.xpose.msra.mxu0 %v608
        %619 = vmatpush.xpose.msra.mxu0 %v605
        %620 = vmatpush.xpose.msra.mxu0 %v602
        %621 = vmatpush.xpose.msra.mxu0 %v599
        %622 = vmatpush.xpose.msra.mxu0 %v596
        %623 = vmatpush.xpose.msra.mxu0 %v593
        %624 = vmatpush.xpose.msra.mxu0 %v590
        %625 = vmatpush.xpose.msra.mxu0 %v587
        %626 = vmatpush.xpose.msra.mxu0 %v584
        %627 = vmatpush.xpose.msra.mxu0 %v581
        %628 = vmatpush.xpose.msra.mxu0 %v578
        %629 = vmatpush.xpose.msra.mxu0 %v575
        %630 = vmatpush.xpose.msra.mxu0 %v572
        %631 = vmatpush.xpose.msra.mxu0 %v569
        %632 = vmatmul.f32.gmra.mxu0 %v566
        %v633 = vpop.f32.mrf.mxu0
        %v634 = vadd.f32 %v564, %v633
        %635 = vdwg.mxu0
        %636 = vst [vmem:[%s273] sm:$0x1] %v634
        %s637 = sand.u32 %s183, 1
        %s638 = scalar_lea.sflag [#allocation4], %s637
        %s639 = sand.u32 %s183, 1
        %s640 = scalar_lea.vmem [#allocation3], %s639
        // Predicated region
        $region49: #{tpu_custom_call.1} parent=47 // pred_check
          %p641 = pneg %p193
        $region50: #{tpu_custom_call.1} parent=47 // pred_check_branch
          %643 = sbr.rel (%p641) target = $region52
        $region51: #{tpu_custom_call.1} parent=47 // pred_region
          %645 = vsyncadd %s638, 0
          %s646 = scalar_lea.hbm %s7, %s23
          %s648 = sshll.u32 %s640, 4
          %s649 = int_to_ptr.vmem [resolvable:$true] %s648
          %s650 = sshll.u32 %s646, 4
          %s651 = int_to_ptr.hbm [resolvable:$true] %s650
          %653 = dma.vmem_to_hbm [thread:$0]  %s649, 16, %s651, %s638
        $region52: #{tpu_custom_call.1} parent=47 // pred_fallthru
          _
      $region48: #{tpu_custom_call.1} parent=5 // pred_fallthru
        _
      %p654 = scmp.le.s32.totalorder 2, %s18
      // Predicated region
      $region53: #{tpu_custom_call.1} parent=5 // pred_check
        %p655 = pneg %p654
      $region54: #{tpu_custom_call.1} parent=5 // pred_check_branch
        %657 = sbr.rel (%p655) target = $region56
      $region55: #{tpu_custom_call.1} parent=5 // pred_region
        %s658 = ssub.s32 %s18, 2
        // Predicated region
        $region57: #{tpu_custom_call.1} parent=55 // pred_check
          %p659 = pneg %p199
        $region58: #{tpu_custom_call.1} parent=55 // pred_check_branch
          %661 = sbr.rel (%p659) target = $region60
        $region59: #{tpu_custom_call.1} parent=55 // pred_region
          %s662 = sand.u32 %s184, 1
          %s663 = scalar_lea.sflag [#allocation4], %s662
          %s664 = sand.u32 %s184, 1
          %s665 = scalar_lea.vmem [#allocation3], %s664
          %667 = dma.done %s663, 16
        $region60: #{tpu_custom_call.1} parent=55 // pred_fallthru
          _
      $region56: #{tpu_custom_call.1} parent=5 // pred_fallthru
        _
    $region6: #{tpu_custom_call.1} parent=1 // loop_footer
      %s22 = sadd.s32 1, %s18
    $region7: #{tpu_custom_call.1} parent=1 // loop_footer_branch
      %17 = sbr.rel target = $region3
    $region8: #{tpu_custom_call.1} parent=1 // loop_exit
      _
    %668 = vsyncpa [#allocation4], 1
    %s669 = scalar_lea.sflag [#allocation4], 1
    %670 = vsyncpa %s669, 1

</llo_original>
